<compile_context>
chip_gen: v5e
topology: v5e:2x2
jax: 0.10.0
libtpu: 0.0.40
codegen_flags: <defaults>
</compile_context>

<pallas_src>
import functools

import jax
import jax.numpy as jnp
from jax.experimental import pallas as pl
from jax.experimental.pallas import tpu as pltpu

# ---- dims implied by the PyTorch __init__ (d_model=64) --------------------
D_MODEL = 64
_TOTAL_RATIO = 10                      # 2 + 2 + 1 + 5
_UNIT = D_MODEL // _TOTAL_RATIO        # 6
_REM = D_MODEL % _TOTAL_RATIO          # 4
AGE_DIM = 2 * _UNIT                    # 12
GENDER_DIM = 2 * _UNIT                 # 12
SIGNUP_DIM = 1 * _UNIT                 # 6
PREF_DIM = 5 * _UNIT + _REM            # 34
GENDER_CATS = 3
PREF_CATS = 5

# concat-order column offsets (within one logical 64-wide row)
AGE_OFF = 0
GENDER_OFF = AGE_OFF + AGE_DIM         # 12
SD_OFF = GENDER_OFF + GENDER_DIM       # 24
PREF_OFF = SD_OFF + SIGNUP_DIM         # 30

# ---- in-kernel feature-block column layout (one 16-wide half) -------------
FEAT_W = 16
COL_AGE = 0
COL_SD = 1
COL_ONE = 2                            # constant 1.0 -> picks up the bias row
COL_G = 3                              # 3 gender one-hot columns (3..5)
COL_P = COL_G + GENDER_CATS            # 5 pref   one-hot columns (6..10)

# ---- packed parameter slab (SLAB_ROWS, 128) --------------------------------
# rows 0:32   : block-diagonal matmul weights (per-half 16x64 block P,
#               duplicated at [0:16, 0:64] and [16:32, 64:128])
# rows 32..40 : RMSNorm epilogue rows (mask/N weights, positioned gammas,
#               embedding passthrough), per lane-fold half
ROW_MS_A_L = 2 * FEAT_W                # 32
ROW_MS_A_R = 33
ROW_MS_S_L = 34
ROW_MS_S_R = 35
ROW_G_A_L = 36
ROW_G_A_R = 37
ROW_G_S_L = 38
ROW_G_S_R = 39
ROW_PASS = 40
SLAB_ROWS = 48                         # padded to a sublane multiple

RMS_EPS = 1.1920929e-07                # torch.finfo(float32).eps (Python float!)


def _round_up(x, m):
    return (x + m - 1) // m * m


def _user_tower_kernel(ff_ref, fi_ref, p_ref, out_ref):
    """ff_ref: (TB,4) f32 [age_e, sd_e, age_o, sd_o] (2-row lane fold);
    fi_ref: (TB,4) i32 [gender_e, pref_e, gender_o, pref_o];
    p_ref: (48,128) packed params; out_ref: (TB,128) f32."""
    tb = ff_ref.shape[0]

    age_e = ff_ref[:, 0:1]
    sd_e = ff_ref[:, 1:2]
    age_o = ff_ref[:, 2:3]
    sd_o = ff_ref[:, 3:4]
    gid_e = fi_ref[:, 0:1]
    pid_e = fi_ref[:, 1:2]
    gid_o = fi_ref[:, 2:3]
    pid_o = fi_ref[:, 3:4]

    # Build the (TB, 32) feature block [age, sd, 1, onehot(g), onehot(p)] for
    # both lane-fold halves with pure selects (no int->f32 convert, no mul).
    lane = jax.lax.broadcasted_iota(jnp.int32, (tb, 2 * FEAT_W), 1)
    feat = jnp.where(lane == COL_AGE, age_e, 0.0)
    feat = jnp.where(lane == COL_SD, sd_e, feat)
    feat = jnp.where(lane == COL_ONE, 1.0, feat)
    feat = jnp.where(lane == gid_e + COL_G, 1.0, feat)
    feat = jnp.where(lane == pid_e + COL_P, 1.0, feat)
    feat = jnp.where(lane == FEAT_W + COL_AGE, age_o, feat)
    feat = jnp.where(lane == FEAT_W + COL_SD, sd_o, feat)
    feat = jnp.where(lane == FEAT_W + COL_ONE, 1.0, feat)
    feat = jnp.where(lane == gid_o + (FEAT_W + COL_G), 1.0, feat)
    feat = jnp.where(lane == pid_o + (FEAT_W + COL_P), 1.0, feat)

    # Fused linear + embedding lookups on the (otherwise idle) MXU.
    # HIGHEST precision keeps the f32 products exact vs the reference.
    h = jnp.dot(feat, p_ref[0:2 * FEAT_W, :],
                precision=jax.lax.Precision.HIGHEST,
                preferred_element_type=jnp.float32)          # (TB, 128)

    # Segment RMSNorm epilogue with pre-folded mask / gamma rows.
    h2 = h * h
    ms_a_l = jnp.sum(h2 * p_ref[ROW_MS_A_L:ROW_MS_A_L + 1, :], -1, keepdims=True)
    ms_a_r = jnp.sum(h2 * p_ref[ROW_MS_A_R:ROW_MS_A_R + 1, :], -1, keepdims=True)
    ms_s_l = jnp.sum(h2 * p_ref[ROW_MS_S_L:ROW_MS_S_L + 1, :], -1, keepdims=True)
    ms_s_r = jnp.sum(h2 * p_ref[ROW_MS_S_R:ROW_MS_S_R + 1, :], -1, keepdims=True)

    scale = (p_ref[ROW_G_A_L:ROW_G_A_L + 1, :] * jax.lax.rsqrt(ms_a_l + RMS_EPS)
             + p_ref[ROW_G_A_R:ROW_G_A_R + 1, :] * jax.lax.rsqrt(ms_a_r + RMS_EPS)
             + p_ref[ROW_G_S_L:ROW_G_S_L + 1, :] * jax.lax.rsqrt(ms_s_l + RMS_EPS)
             + p_ref[ROW_G_S_R:ROW_G_S_R + 1, :] * jax.lax.rsqrt(ms_s_r + RMS_EPS)
             + p_ref[ROW_PASS:ROW_PASS + 1, :])

    out_ref[...] = h * scale


def pack_params(params):
    """Pack the 8 parameter arrays into one (48, 128) f32 slab (single DMA)."""
    # Per-half (16, 64) matmul block P: feat column k multiplies row k.
    P = jnp.zeros((FEAT_W, D_MODEL), jnp.float32)
    P = P.at[COL_AGE, AGE_OFF:AGE_OFF + AGE_DIM].set(params["age_w"][0])
    P = P.at[COL_SD, SD_OFF:SD_OFF + SIGNUP_DIM].set(params["sd_w"][0])
    P = P.at[COL_ONE, AGE_OFF:AGE_OFF + AGE_DIM].set(params["age_b"][0])
    P = P.at[COL_ONE, SD_OFF:SD_OFF + SIGNUP_DIM].set(params["sd_b"][0])
    P = P.at[COL_G:COL_G + GENDER_CATS,
             GENDER_OFF:GENDER_OFF + GENDER_DIM].set(params["gender_table"])
    P = P.at[COL_P:COL_P + PREF_CATS,
             PREF_OFF:PREF_OFF + PREF_DIM].set(params["pref_table"])

    slab = jnp.zeros((SLAB_ROWS, 2 * D_MODEL), jnp.float32)
    slab = slab.at[0:FEAT_W, 0:D_MODEL].set(P)                       # even rows
    slab = slab.at[FEAT_W:2 * FEAT_W, D_MODEL:2 * D_MODEL].set(P)    # odd rows

    # Epilogue rows: mean-square weights, positioned gammas, passthrough.
    slab = slab.at[ROW_MS_A_L, AGE_OFF:AGE_OFF + AGE_DIM].set(1.0 / AGE_DIM)
    slab = slab.at[ROW_MS_A_R, D_MODEL + AGE_OFF:D_MODEL + AGE_OFF + AGE_DIM].set(1.0 / AGE_DIM)
    slab = slab.at[ROW_MS_S_L, SD_OFF:SD_OFF + SIGNUP_DIM].set(1.0 / SIGNUP_DIM)
    slab = slab.at[ROW_MS_S_R, D_MODEL + SD_OFF:D_MODEL + SD_OFF + SIGNUP_DIM].set(1.0 / SIGNUP_DIM)
    slab = slab.at[ROW_G_A_L, AGE_OFF:AGE_OFF + AGE_DIM].set(params["age_gamma"][0])
    slab = slab.at[ROW_G_A_R, D_MODEL + AGE_OFF:D_MODEL + AGE_OFF + AGE_DIM].set(params["age_gamma"][0])
    slab = slab.at[ROW_G_S_L, SD_OFF:SD_OFF + SIGNUP_DIM].set(params["sd_gamma"][0])
    slab = slab.at[ROW_G_S_R, D_MODEL + SD_OFF:D_MODEL + SD_OFF + SIGNUP_DIM].set(params["sd_gamma"][0])

    passrow = jnp.zeros((2 * D_MODEL,), jnp.float32)
    for off in (0, D_MODEL):
        passrow = passrow.at[off + GENDER_OFF:off + GENDER_OFF + GENDER_DIM].set(1.0)
        passrow = passrow.at[off + PREF_OFF:off + PREF_OFF + PREF_DIM].set(1.0)
    slab = slab.at[ROW_PASS].set(passrow)
    return slab


@functools.partial(jax.jit, static_argnames=("block_rows",))
def user_tower_forward(age, gender, signup_date, preferences, params,
                       block_rows=8192):
    """age/signup_date: (B,1) f32; gender/preferences: (B,1) i32 -> (B,64) f32."""
    B = age.shape[0]
    ff = jnp.concatenate(
        [age.reshape(B, 1), signup_date.reshape(B, 1)], axis=-1
    ).astype(jnp.float32)
    fi = jnp.concatenate(
        [gender.reshape(B, 1), preferences.reshape(B, 1)], axis=-1
    ).astype(jnp.int32)
    p_slab = pack_params(params)

    # Lane fold x2: pad B to a multiple of 16 so the folded row count (bf) is
    # a multiple of 8, then view two logical rows per folded row.
    bp = _round_up(B, 16)
    if bp != B:
        ff = jnp.pad(ff, ((0, bp - B), (0, 0)))
        fi = jnp.pad(fi, ((0, bp - B), (0, 0)))
    bf = bp // 2
    ff = ff.reshape(bf, 4)
    fi = fi.reshape(bf, 4)

    # Folded batch tile: as big as requested, multiple of 8, and capped so the
    # grid has >= 2 steps when possible (v7x megacore sharding).
    tb = min(_round_up(max(block_rows, 16) // 2, 8), bf)
    if bf > 8:
        tb = min(tb, _round_up(-(-bf // 2), 8))
    bfp = _round_up(bf, tb)
    if bfp != bf:
        ff = jnp.pad(ff, ((0, bfp - bf), (0, 0)))
        fi = jnp.pad(fi, ((0, bfp - bf), (0, 0)))

    out = pl.pallas_call(
        _user_tower_kernel,
        out_shape=jax.ShapeDtypeStruct((bfp, 2 * D_MODEL), jnp.float32),
        grid=(bfp // tb,),
        in_specs=[
            pl.BlockSpec((tb, 4), lambda i: (i, 0)),                   # f32 feats
            pl.BlockSpec((tb, 4), lambda i: (i, 0)),                   # i32 ids
            pl.BlockSpec((SLAB_ROWS, 2 * D_MODEL), lambda i: (0, 0)),  # param slab
        ],
        out_specs=pl.BlockSpec((tb, 2 * D_MODEL), lambda i: (i, 0)),
        compiler_params=pltpu.CompilerParams(
            dimension_semantics=("parallel",),
            vmem_limit_bytes=32 * 1024 * 1024),
    )(ff, fi, p_slab)

    # Unfold: (bf, 128) -> (bp, 64) -> (B, 64).
    return out[:bf].reshape(bp, D_MODEL)[:B]


def init_params(key):
    ks = jax.random.split(key, 6)
    return {
        # Linear(1, AGE_DIM): weight stored transposed as (1, AGE_DIM)
        "age_w": jax.random.normal(ks[0], (1, AGE_DIM), jnp.float32) * 0.5,
        "age_b": jax.random.normal(ks[1], (1, AGE_DIM), jnp.float32) * 0.1,
        "age_gamma": jnp.ones((1, AGE_DIM), jnp.float32),
        # Linear(1, SIGNUP_DIM)
        "sd_w": jax.random.normal(ks[2], (1, SIGNUP_DIM), jnp.float32) * 0.5,
        "sd_b": jax.random.normal(ks[3], (1, SIGNUP_DIM), jnp.float32) * 0.1,
        "sd_gamma": jnp.ones((1, SIGNUP_DIM), jnp.float32),
        # Embedding tables (torch init: N(0,1))
        "gender_table": jax.random.normal(ks[4], (GENDER_CATS, GENDER_DIM), jnp.float32),
        "pref_table": jax.random.normal(ks[5], (PREF_CATS, PREF_DIM), jnp.float32),
    }


def _reference(age, gender, signup_date, preferences, p):
    def rms(x, g):
        return x * jax.lax.rsqrt(jnp.mean(x * x, -1, keepdims=True) + RMS_EPS) * g
    a = rms(age @ p["age_w"] + p["age_b"], p["age_gamma"])
    s = rms(signup_date @ p["sd_w"] + p["sd_b"], p["sd_gamma"])
    g = p["gender_table"][gender[:, 0]]
    pr = p["pref_table"][preferences[:, 0]]
    return jnp.concatenate([a, g, s, pr], axis=-1)


if __name__ == "__main__":
    key = jax.random.PRNGKey(0)
    k_age, k_sd, k_g, k_p, k_params = jax.random.split(key, 5)
    params = init_params(k_params)

    # Small demo batch.
    B = 8
    age = jax.random.normal(k_age, (B, 1), jnp.float32)
    signup_date = jax.random.normal(k_sd, (B, 1), jnp.float32)
    gender = jax.random.randint(k_g, (B, 1), 0, GENDER_CATS, jnp.int32)
    preferences = jax.random.randint(k_p, (B, 1), 0, PREF_CATS, jnp.int32)

    out = user_tower_forward(age, gender, signup_date, preferences, params)
    out = jax.block_until_ready(out)
    ref = _reference(age, gender, signup_date, preferences, params)
    assert out.shape == (B, D_MODEL)
    assert jnp.allclose(out, ref, atol=1e-4, rtol=1e-4)

    # Second shape exercising multi-step grid + ragged-batch padding.
    B2 = 300
    k2 = jax.random.split(key, 4)
    age2 = jax.random.normal(k2[0], (B2, 1), jnp.float32)
    sd2 = jax.random.normal(k2[1], (B2, 1), jnp.float32)
    g2 = jax.random.randint(k2[2], (B2, 1), 0, GENDER_CATS, jnp.int32)
    p2 = jax.random.randint(k2[3], (B2, 1), 0, PREF_CATS, jnp.int32)
    out2 = user_tower_forward(age2, g2, sd2, p2, params, block_rows=64)
    out2 = jax.block_until_ready(out2)
    ref2 = _reference(age2, g2, sd2, p2, params)
    assert out2.shape == (B2, D_MODEL)
    assert jnp.allclose(out2, ref2, atol=1e-4, rtol=1e-4)

    print("KERNEL_OK")
</pallas_src>

<mosaic_0001>
module attributes {stable_mosaic.version = 11 : i64} {
  func.func @_user_tower_kernel(%arg0: i32, %arg1: memref<8x4xf32, #tpu.memory_space<vmem>>, %arg2: memref<8x4xi32, #tpu.memory_space<vmem>>, %arg3: memref<48x128xf32, #tpu.memory_space<vmem>>, %arg4: memref<8x128xf32, #tpu.memory_space<vmem>>) attributes {dimension_semantics = [#tpu.dimension_semantics<parallel>], iteration_bounds = array<i64: 1>, scalar_prefetch = 0 : i64, scratch_operands = 0 : i64, tpu.core_type = #tpu.core_type<tc>, window_params = [{transform_indices = @transform_0, window_bounds = array<i64: 8, 4>}, {transform_indices = @transform_1, window_bounds = array<i64: 8, 4>}, {pipeline_mode = #tpu.pipeline_mode<synchronous>, transform_indices = @transform_2, window_bounds = array<i64: 48, 128>}, {transform_indices = @transform_3, window_bounds = array<i64: 8, 128>}]} {
    %c0 = arith.constant 0 : index
    %c0_0 = arith.constant 0 : index
    %0 = vector.load %arg1[%c0, %c0_0] : memref<8x4xf32, #tpu.memory_space<vmem>>, vector<8x1xf32>
    %c0_1 = arith.constant 0 : index
    %c1 = arith.constant 1 : index
    %1 = vector.load %arg1[%c0_1, %c1] : memref<8x4xf32, #tpu.memory_space<vmem>>, vector<8x1xf32>
    %c0_2 = arith.constant 0 : index
    %c2 = arith.constant 2 : index
    %2 = vector.load %arg1[%c0_2, %c2] : memref<8x4xf32, #tpu.memory_space<vmem>>, vector<8x1xf32>
    %c0_3 = arith.constant 0 : index
    %c3 = arith.constant 3 : index
    %3 = vector.load %arg1[%c0_3, %c3] : memref<8x4xf32, #tpu.memory_space<vmem>>, vector<8x1xf32>
    %c0_4 = arith.constant 0 : index
    %c0_5 = arith.constant 0 : index
    %4 = vector.load %arg2[%c0_4, %c0_5] : memref<8x4xi32, #tpu.memory_space<vmem>>, vector<8x1xi32>
    %c0_6 = arith.constant 0 : index
    %c1_7 = arith.constant 1 : index
    %5 = vector.load %arg2[%c0_6, %c1_7] : memref<8x4xi32, #tpu.memory_space<vmem>>, vector<8x1xi32>
    %c0_8 = arith.constant 0 : index
    %c2_9 = arith.constant 2 : index
    %6 = vector.load %arg2[%c0_8, %c2_9] : memref<8x4xi32, #tpu.memory_space<vmem>>, vector<8x1xi32>
    %c0_10 = arith.constant 0 : index
    %c3_11 = arith.constant 3 : index
    %7 = vector.load %arg2[%c0_10, %c3_11] : memref<8x4xi32, #tpu.memory_space<vmem>>, vector<8x1xi32>
    %8 = tpu.iota {dimensions = array<i32: 1>} : vector<8x32xi32>
    %c0_i32 = arith.constant 0 : i32
    %9 = vector.broadcast %c0_i32 : i32 to vector<8x32xi32>
    %10 = arith.cmpi eq, %8, %9 : vector<8x32xi32>
    %cst = arith.constant 0.000000e+00 : f32
    %11 = vector.shape_cast %0 : vector<8x1xf32> to vector<8x1xf32>
    %12 = vector.broadcast %11 : vector<8x1xf32> to vector<8x32xf32>
    %13 = vector.broadcast %cst : f32 to vector<8x32xf32>
    %14 = arith.select %10, %12, %13 : vector<8x32xi1>, vector<8x32xf32>
    %c1_i32 = arith.constant 1 : i32
    %15 = vector.broadcast %c1_i32 : i32 to vector<8x32xi32>
    %16 = arith.cmpi eq, %8, %15 : vector<8x32xi32>
    %17 = vector.shape_cast %1 : vector<8x1xf32> to vector<8x1xf32>
    %18 = vector.broadcast %17 : vector<8x1xf32> to vector<8x32xf32>
    %19 = arith.select %16, %18, %14 : vector<8x32xi1>, vector<8x32xf32>
    %c2_i32 = arith.constant 2 : i32
    %20 = vector.broadcast %c2_i32 : i32 to vector<8x32xi32>
    %21 = arith.cmpi eq, %8, %20 : vector<8x32xi32>
    %cst_12 = arith.constant 1.000000e+00 : f32
    %22 = vector.broadcast %cst_12 : f32 to vector<8x32xf32>
    %23 = arith.select %21, %22, %19 : vector<8x32xi1>, vector<8x32xf32>
    %c3_i32 = arith.constant 3 : i32
    %24 = vector.broadcast %c3_i32 : i32 to vector<8x1xi32>
    %25 = arith.addi %4, %24 : vector<8x1xi32>
    %26 = vector.broadcast %25 : vector<8x1xi32> to vector<8x32xi32>
    %27 = arith.cmpi eq, %8, %26 : vector<8x32xi32>
    %cst_13 = arith.constant 1.000000e+00 : f32
    %28 = vector.broadcast %cst_13 : f32 to vector<8x32xf32>
    %29 = arith.select %27, %28, %23 : vector<8x32xi1>, vector<8x32xf32>
    %c6_i32 = arith.constant 6 : i32
    %30 = vector.broadcast %c6_i32 : i32 to vector<8x1xi32>
    %31 = arith.addi %5, %30 : vector<8x1xi32>
    %32 = vector.broadcast %31 : vector<8x1xi32> to vector<8x32xi32>
    %33 = arith.cmpi eq, %8, %32 : vector<8x32xi32>
    %cst_14 = arith.constant 1.000000e+00 : f32
    %34 = vector.broadcast %cst_14 : f32 to vector<8x32xf32>
    %35 = arith.select %33, %34, %29 : vector<8x32xi1>, vector<8x32xf32>
    %c16_i32 = arith.constant 16 : i32
    %36 = vector.broadcast %c16_i32 : i32 to vector<8x32xi32>
    %37 = arith.cmpi eq, %8, %36 : vector<8x32xi32>
    %38 = vector.shape_cast %2 : vector<8x1xf32> to vector<8x1xf32>
    %39 = vector.broadcast %38 : vector<8x1xf32> to vector<8x32xf32>
    %40 = arith.select %37, %39, %35 : vector<8x32xi1>, vector<8x32xf32>
    %c17_i32 = arith.constant 17 : i32
    %41 = vector.broadcast %c17_i32 : i32 to vector<8x32xi32>
    %42 = arith.cmpi eq, %8, %41 : vector<8x32xi32>
    %43 = vector.shape_cast %3 : vector<8x1xf32> to vector<8x1xf32>
    %44 = vector.broadcast %43 : vector<8x1xf32> to vector<8x32xf32>
    %45 = arith.select %42, %44, %40 : vector<8x32xi1>, vector<8x32xf32>
    %c18_i32 = arith.constant 18 : i32
    %46 = vector.broadcast %c18_i32 : i32 to vector<8x32xi32>
    %47 = arith.cmpi eq, %8, %46 : vector<8x32xi32>
    %cst_15 = arith.constant 1.000000e+00 : f32
    %48 = vector.broadcast %cst_15 : f32 to vector<8x32xf32>
    %49 = arith.select %47, %48, %45 : vector<8x32xi1>, vector<8x32xf32>
    %c19_i32 = arith.constant 19 : i32
    %50 = vector.broadcast %c19_i32 : i32 to vector<8x1xi32>
    %51 = arith.addi %6, %50 : vector<8x1xi32>
    %52 = vector.broadcast %51 : vector<8x1xi32> to vector<8x32xi32>
    %53 = arith.cmpi eq, %8, %52 : vector<8x32xi32>
    %cst_16 = arith.constant 1.000000e+00 : f32
    %54 = vector.broadcast %cst_16 : f32 to vector<8x32xf32>
    %55 = arith.select %53, %54, %49 : vector<8x32xi1>, vector<8x32xf32>
    %c22_i32 = arith.constant 22 : i32
    %56 = vector.broadcast %c22_i32 : i32 to vector<8x1xi32>
    %57 = arith.addi %7, %56 : vector<8x1xi32>
    %58 = vector.broadcast %57 : vector<8x1xi32> to vector<8x32xi32>
    %59 = arith.cmpi eq, %8, %58 : vector<8x32xi32>
    %cst_17 = arith.constant 1.000000e+00 : f32
    %60 = vector.broadcast %cst_17 : f32 to vector<8x32xf32>
    %61 = arith.select %59, %60, %55 : vector<8x32xi1>, vector<8x32xf32>
    %c0_18 = arith.constant 0 : index
    %c0_19 = arith.constant 0 : index
    %62 = vector.load %arg3[%c0_18, %c0_19] : memref<48x128xf32, #tpu.memory_space<vmem>>, vector<32x128xf32>
    %cst_20 = arith.constant dense<0.000000e+00> : vector<8x128xf32>
    %63 = tpu.matmul %61, %62, %cst_20 {dimension_numbers = #tpu.dot_dimension_numbers<[1], [0], [0], [1], [0, 0, 1, 1], [], []>, precision = #tpu.contract_precision<fp32>} : vector<8x32xf32>, vector<32x128xf32>, vector<8x128xf32> -> vector<8x128xf32>
    %64 = arith.mulf %63, %63 : vector<8x128xf32>
    %c32 = arith.constant 32 : index
    %c0_21 = arith.constant 0 : index
    %65 = vector.load %arg3[%c32, %c0_21] : memref<48x128xf32, #tpu.memory_space<vmem>>, vector<1x128xf32>
    %66 = vector.broadcast %65 : vector<1x128xf32> to vector<8x128xf32>
    %67 = arith.mulf %64, %66 : vector<8x128xf32>
    %cst_22 = arith.constant dense<0.000000e+00> : vector<8xf32>
    %68 = vector.multi_reduction <add>, %67, %cst_22 [1] : vector<8x128xf32> to vector<8xf32>
    %69 = vector.shape_cast %68 : vector<8xf32> to vector<8x1xf32>
    %c33 = arith.constant 33 : index
    %c0_23 = arith.constant 0 : index
    %70 = vector.load %arg3[%c33, %c0_23] : memref<48x128xf32, #tpu.memory_space<vmem>>, vector<1x128xf32>
    %71 = vector.broadcast %70 : vector<1x128xf32> to vector<8x128xf32>
    %72 = arith.mulf %64, %71 : vector<8x128xf32>
    %cst_24 = arith.constant dense<0.000000e+00> : vector<8xf32>
    %73 = vector.multi_reduction <add>, %72, %cst_24 [1] : vector<8x128xf32> to vector<8xf32>
    %74 = vector.shape_cast %73 : vector<8xf32> to vector<8x1xf32>
    %c34 = arith.constant 34 : index
    %c0_25 = arith.constant 0 : index
    %75 = vector.load %arg3[%c34, %c0_25] : memref<48x128xf32, #tpu.memory_space<vmem>>, vector<1x128xf32>
    %76 = vector.broadcast %75 : vector<1x128xf32> to vector<8x128xf32>
    %77 = arith.mulf %64, %76 : vector<8x128xf32>
    %cst_26 = arith.constant dense<0.000000e+00> : vector<8xf32>
    %78 = vector.multi_reduction <add>, %77, %cst_26 [1] : vector<8x128xf32> to vector<8xf32>
    %79 = vector.shape_cast %78 : vector<8xf32> to vector<8x1xf32>
    %c35 = arith.constant 35 : index
    %c0_27 = arith.constant 0 : index
    %80 = vector.load %arg3[%c35, %c0_27] : memref<48x128xf32, #tpu.memory_space<vmem>>, vector<1x128xf32>
    %81 = vector.broadcast %80 : vector<1x128xf32> to vector<8x128xf32>
    %82 = arith.mulf %64, %81 : vector<8x128xf32>
    %cst_28 = arith.constant dense<0.000000e+00> : vector<8xf32>
    %83 = vector.multi_reduction <add>, %82, %cst_28 [1] : vector<8x128xf32> to vector<8xf32>
    %84 = vector.shape_cast %83 : vector<8xf32> to vector<8x1xf32>
    %c36 = arith.constant 36 : index
    %c0_29 = arith.constant 0 : index
    %85 = vector.load %arg3[%c36, %c0_29] : memref<48x128xf32, #tpu.memory_space<vmem>>, vector<1x128xf32>
    %cst_30 = arith.constant 1.1920929E-7 : f32
    %86 = vector.broadcast %cst_30 : f32 to vector<8x1xf32>
    %87 = arith.addf %69, %86 : vector<8x1xf32>
    %88 = math.rsqrt %87 : vector<8x1xf32>
    %89 = vector.broadcast %85 : vector<1x128xf32> to vector<8x128xf32>
    %90 = vector.broadcast %88 : vector<8x1xf32> to vector<8x128xf32>
    %91 = arith.mulf %89, %90 : vector<8x128xf32>
    %c37 = arith.constant 37 : index
    %c0_31 = arith.constant 0 : index
    %92 = vector.load %arg3[%c37, %c0_31] : memref<48x128xf32, #tpu.memory_space<vmem>>, vector<1x128xf32>
    %cst_32 = arith.constant 1.1920929E-7 : f32
    %93 = vector.broadcast %cst_32 : f32 to vector<8x1xf32>
    %94 = arith.addf %74, %93 : vector<8x1xf32>
    %95 = math.rsqrt %94 : vector<8x1xf32>
    %96 = vector.broadcast %92 : vector<1x128xf32> to vector<8x128xf32>
    %97 = vector.broadcast %95 : vector<8x1xf32> to vector<8x128xf32>
    %98 = arith.mulf %96, %97 : vector<8x128xf32>
    %99 = arith.addf %91, %98 : vector<8x128xf32>
    %c38 = arith.constant 38 : index
    %c0_33 = arith.constant 0 : index
    %100 = vector.load %arg3[%c38, %c0_33] : memref<48x128xf32, #tpu.memory_space<vmem>>, vector<1x128xf32>
    %cst_34 = arith.constant 1.1920929E-7 : f32
    %101 = vector.broadcast %cst_34 : f32 to vector<8x1xf32>
    %102 = arith.addf %79, %101 : vector<8x1xf32>
    %103 = math.rsqrt %102 : vector<8x1xf32>
    %104 = vector.broadcast %100 : vector<1x128xf32> to vector<8x128xf32>
    %105 = vector.broadcast %103 : vector<8x1xf32> to vector<8x128xf32>
    %106 = arith.mulf %104, %105 : vector<8x128xf32>
    %107 = arith.addf %99, %106 : vector<8x128xf32>
    %c39 = arith.constant 39 : index
    %c0_35 = arith.constant 0 : index
    %108 = vector.load %arg3[%c39, %c0_35] : memref<48x128xf32, #tpu.memory_space<vmem>>, vector<1x128xf32>
    %cst_36 = arith.constant 1.1920929E-7 : f32
    %109 = vector.broadcast %cst_36 : f32 to vector<8x1xf32>
    %110 = arith.addf %84, %109 : vector<8x1xf32>
    %111 = math.rsqrt %110 : vector<8x1xf32>
    %112 = vector.broadcast %108 : vector<1x128xf32> to vector<8x128xf32>
    %113 = vector.broadcast %111 : vector<8x1xf32> to vector<8x128xf32>
    %114 = arith.mulf %112, %113 : vector<8x128xf32>
    %115 = arith.addf %107, %114 : vector<8x128xf32>
    %c40 = arith.constant 40 : index
    %c0_37 = arith.constant 0 : index
    %116 = vector.load %arg3[%c40, %c0_37] : memref<48x128xf32, #tpu.memory_space<vmem>>, vector<1x128xf32>
    %117 = vector.broadcast %116 : vector<1x128xf32> to vector<8x128xf32>
    %118 = arith.addf %115, %117 : vector<8x128xf32>
    %119 = arith.mulf %63, %118 : vector<8x128xf32>
    %c0_38 = arith.constant 0 : index
    %c0_39 = arith.constant 0 : index
    %120 = vector.load %arg4[%c0_38, %c0_39] : memref<8x128xf32, #tpu.memory_space<vmem>>, vector<8x128xf32>
    tpu.vector_store %arg4[%c0_38, %c0_39], %119 {strides = array<i32>} : memref<8x128xf32, #tpu.memory_space<vmem>>, vector<8x128xf32>,
    return
  }
  func.func @transform_0(%arg0: i32) -> (i32, i32) {
    %c0_i32 = arith.constant 0 : i32
    %c0_i32_0 = arith.constant 0 : i32
    return %arg0, %c0_i32 : i32, i32
  }
  func.func @transform_1(%arg0: i32) -> (i32, i32) {
    %c0_i32 = arith.constant 0 : i32
    %c0_i32_0 = arith.constant 0 : i32
    return %arg0, %c0_i32 : i32, i32
  }
  func.func @transform_2(%arg0: i32) -> (i32, i32) {
    %c0_i32 = arith.constant 0 : i32
    %c0_i32_0 = arith.constant 0 : i32
    %c0_i32_1 = arith.constant 0 : i32
    return %c0_i32, %c0_i32_0 : i32, i32
  }
  func.func @transform_3(%arg0: i32) -> (i32, i32) {
    %c0_i32 = arith.constant 0 : i32
    %c0_i32_0 = arith.constant 0 : i32
    return %arg0, %c0_i32 : i32, i32
  }
}

</mosaic_0001>

<llo_original>
// kernel: user_tower_forward.1
$region0: #{user_tower_forward.1}
  #allocation0 [shape = 'u32[]', space=smem, size = 0x4, offset = 0x4, fixed_abs, tag = 'smem constant byte address 0x4 - core index']
  #allocation1 [shape = 'u32[72,128]{1,0:T(1,128)}', space=vmem, size = 0x9000, scoped, tag = 'internal scratch']
  %s0 = inlined_call_operand.vmem [shape: f32[8,4], index: 0, kind: input, shape index: {}]
  %s1 = inlined_call_operand.vmem [shape: s32[8,4], index: 1, kind: input, shape index: {}]
  %s2 = inlined_call_operand.vmem [shape: f32[48,128], index: 2, kind: input, shape index: {}]
  %s3 = inlined_call_operand.vmem [shape: f32[8,128], index: 3, kind: output, shape index: {}]
  %s4 = sld [smem:[#allocation0]]
  $region22: #{user_tower_forward.1} parent=0
    _
  %s6 = ssub.s32 1, %s4
  %s7 = scalar_select 0, %s6, %s4
  // Predicated region
  $region2: #{user_tower_forward.1} parent=0 // pred_check
    _
  $region3: #{user_tower_forward.1} parent=0 // pred_check_branch
    %9 = sbr.rel (0) target = $region5
  $region4: #{user_tower_forward.1} parent=0 // pred_region
    _
  $region5: #{user_tower_forward.1} parent=0 // pred_fallthru
    _
  // Predicated region
  $region6: #{user_tower_forward.1} parent=0 // pred_check
    _
  $region7: #{user_tower_forward.1} parent=0 // pred_check_branch
    %11 = sbr.rel (0) target = $region9
  $region8: #{user_tower_forward.1} parent=0 // pred_region
    _
  $region9: #{user_tower_forward.1} parent=0 // pred_fallthru
    _
  // Predicated region
  $region10: #{user_tower_forward.1} parent=0 // pred_check
    _
  $region11: #{user_tower_forward.1} parent=0 // pred_check_branch
    %13 = sbr.rel (0) target = $region13
  $region12: #{user_tower_forward.1} parent=0 // pred_region
    _
  $region13: #{user_tower_forward.1} parent=0 // pred_fallthru
    _
  %v14 = vld [vmem:[%s0] sm:$0xff]
  %v15 = vld [vmem:[%s1] sm:$0xff]
  %v16 = vlaneseq
  %v17 = vand.u32 %v16, 127
  %vm18 = vcmp.eq.s32.totalorder %v17, 0
  %20 = vset.pattern.permute.xlu0 0
  %21 = vperm.xlu0 %20, %v14
  %v22 = vpop.permute.xlu0 %21
  %v24 = vsel %vm18, %v22, 0.0
  %vm25 = vcmp.eq.s32.totalorder %v17, 1
  %26 = vset.pattern.permute.xlu0 1
  %27 = vperm.xlu0 %26, %v14
  %v28 = vpop.permute.xlu0 %27
  %v30 = vsel %vm25, %v28, %v24
  %vm31 = vcmp.eq.s32.totalorder %v17, 2
  %v32 = vsel %vm31, 1.0, %v30
  %v33 = vadd.s32 %v15, 3
  %34 = vset.pattern.permute.xlu0 0
  %35 = vperm.xlu0 %34, %v33
  %v36 = vpop.permute.xlu0 %35
  %vm37 = vcmp.eq.s32.totalorder %v17, %v36
  %v38 = vsel %vm37, 1.0, %v32
  %v39 = vadd.s32 %v15, 6
  %40 = vset.pattern.permute.xlu0 1
  %41 = vperm.xlu0 %40, %v39
  %v42 = vpop.permute.xlu0 %41
  %vm43 = vcmp.eq.s32.totalorder %v17, %v42
  %v44 = vsel %vm43, 1.0, %v38
  %vm45 = vcmp.eq.s32.totalorder %v17, 16
  %46 = vset.pattern.permute.xlu0 2
  %47 = vperm.xlu0 %46, %v14
  %v48 = vpop.permute.xlu0 %47
  %v50 = vsel %vm45, %v48, %v44
  %vm51 = vcmp.eq.s32.totalorder %v17, 17
  %52 = vset.pattern.permute.xlu0 3
  %53 = vperm.xlu0 %52, %v14
  %v54 = vpop.permute.xlu0 %53
  %v56 = vsel %vm51, %v54, %v50
  %vm57 = vcmp.eq.s32.totalorder %v17, 18
  %v58 = vsel %vm57, 1.0, %v56
  %v59 = vadd.s32 %v15, 19
  %60 = vset.pattern.permute.xlu0 2
  %61 = vperm.xlu0 %60, %v59
  %v62 = vpop.permute.xlu0 %61
  %vm63 = vcmp.eq.s32.totalorder %v17, %v62
  %v64 = vsel %vm63, 1.0, %v58
  %v65 = vadd.s32 %v15, 22
  %66 = vset.pattern.permute.xlu0 3
  %67 = vperm.xlu0 %66, %v65
  %v68 = vpop.permute.xlu0 %67
  %vm69 = vcmp.eq.s32.totalorder %v17, %v68
  %v70 = vsel %vm69, 1.0, %v64
  %v71 = vld [vmem:[%s2] sm:$0xff]
  %v72 = vld [vmem:[%s2 + $0x8] sm:$0xff]
  %v73 = vld [vmem:[%s2 + $0x10] sm:$0xff]
  %v74 = vld [vmem:[%s2 + $0x18] sm:$0xff]
  %vm75 = vcmask 261120
  %v77 = vsel %vm75, %v70, 0
  %79 = vmatpush.msra.mxu0 0.0
  %80 = vmatpush.msra.mxu0 0.0
  %81 = vmatpush.msra.mxu0 0.0
  %82 = vmatpush.msra.mxu0 0.0
  %83 = vmatpush.msra.mxu0 0.0
  %84 = vmatpush.msra.mxu0 0.0
  %85 = vmatpush.msra.mxu0 0.0
  %86 = vmatpush.msra.mxu0 0.0
  %87 = vmatpush.msra.mxu0 0.0
  %88 = vmatpush.msra.mxu0 0.0
  %89 = vmatpush.msra.mxu0 0.0
  %90 = vmatpush.msra.mxu0 0.0
  %v91 = vand.u32 %v74, 4294901760
  %92 = vmatpush.msra.mxu0 %v91
  %v93 = vand.u32 %v73, 4294901760
  %94 = vmatpush.msra.mxu0 %v93
  %v95 = vand.u32 %v72, 4294901760
  %96 = vmatpush.msra.mxu0 %v95
  %v97 = vand.u32 %v71, 4294901760
  %98 = vmatpush.msra.mxu0 %v97
  %v99 = vand.u32 %v77, 4294901760
  %v100 = vsub.f32 %v77, %v99
  %v101 = vand.u32 %v100, 4294901760
  %v102 = vsub.f32 %v100, %v101
  %v103 = vand.u32 %v102, 4294901760
  %104 = vmatmul.f32.gmra.mxu0 %v103
  %v105 = vpop.f32.mrf.mxu0
  %v106 = vadd.f32 0.0, %v105
  %107 = vdwg.mxu0
  %108 = vmatpush.msra.mxu0 0.0
  %109 = vmatpush.msra.mxu0 0.0
  %110 = vmatpush.msra.mxu0 0.0
  %111 = vmatpush.msra.mxu0 0.0
  %112 = vmatpush.msra.mxu0 0.0
  %113 = vmatpush.msra.mxu0 0.0
  %114 = vmatpush.msra.mxu0 0.0
  %115 = vmatpush.msra.mxu0 0.0
  %116 = vmatpush.msra.mxu0 0.0
  %117 = vmatpush.msra.mxu0 0.0
  %118 = vmatpush.msra.mxu0 0.0
  %119 = vmatpush.msra.mxu0 0.0
  %v120 = vand.u32 %v74, 4294901760
  %v121 = vsub.f32 %v74, %v120
  %v122 = vand.u32 %v121, 4294901760
  %v123 = vsub.f32 %v121, %v122
  %v124 = vand.u32 %v123, 4294901760
  %125 = vmatpush.msra.mxu0 %v124
  %v126 = vand.u32 %v73, 4294901760
  %v127 = vsub.f32 %v73, %v126
  %v128 = vand.u32 %v127, 4294901760
  %v129 = vsub.f32 %v127, %v128
  %v130 = vand.u32 %v129, 4294901760
  %131 = vmatpush.msra.mxu0 %v130
  %v132 = vand.u32 %v72, 4294901760
  %v133 = vsub.f32 %v72, %v132
  %v134 = vand.u32 %v133, 4294901760
  %v135 = vsub.f32 %v133, %v134
  %v136 = vand.u32 %v135, 4294901760
  %137 = vmatpush.msra.mxu0 %v136
  %v138 = vand.u32 %v71, 4294901760
  %v139 = vsub.f32 %v71, %v138
  %v140 = vand.u32 %v139, 4294901760
  %v141 = vsub.f32 %v139, %v140
  %v142 = vand.u32 %v141, 4294901760
  %143 = vmatpush.msra.mxu0 %v142
  %v144 = vand.u32 %v77, 4294901760
  %145 = vmatmul.f32.gmra.mxu0 %v144
  %v146 = vpop.f32.mrf.mxu0
  %v147 = vadd.f32 %v106, %v146
  %148 = vdwg.mxu0
  %149 = vmatpush.msra.mxu0 0.0
  %150 = vmatpush.msra.mxu0 0.0
  %151 = vmatpush.msra.mxu0 0.0
  %152 = vmatpush.msra.mxu0 0.0
  %153 = vmatpush.msra.mxu0 0.0
  %154 = vmatpush.msra.mxu0 0.0
  %155 = vmatpush.msra.mxu0 0.0
  %156 = vmatpush.msra.mxu0 0.0
  %157 = vmatpush.msra.mxu0 0.0
  %158 = vmatpush.msra.mxu0 0.0
  %159 = vmatpush.msra.mxu0 0.0
  %160 = vmatpush.msra.mxu0 0.0
  %v161 = vand.u32 %v74, 4294901760
  %v162 = vsub.f32 %v74, %v161
  %163 = vmatpush.msra.mxu0 %v162
  %v164 = vand.u32 %v73, 4294901760
  %v165 = vsub.f32 %v73, %v164
  %166 = vmatpush.msra.mxu0 %v165
  %v167 = vand.u32 %v72, 4294901760
  %v168 = vsub.f32 %v72, %v167
  %169 = vmatpush.msra.mxu0 %v168
  %v170 = vand.u32 %v71, 4294901760
  %v171 = vsub.f32 %v71, %v170
  %172 = vmatpush.msra.mxu0 %v171
  %v173 = vand.u32 %v77, 4294901760
  %v174 = vsub.f32 %v77, %v173
  %175 = vmatmul.f32.gmra.mxu0 %v174
  %v176 = vpop.f32.mrf.mxu0
  %v177 = vadd.f32 %v147, %v176
  %178 = vdwg.mxu0
  %179 = vmatpush.msra.mxu0 0.0
  %180 = vmatpush.msra.mxu0 0.0
  %181 = vmatpush.msra.mxu0 0.0
  %182 = vmatpush.msra.mxu0 0.0
  %183 = vmatpush.msra.mxu0 0.0
  %184 = vmatpush.msra.mxu0 0.0
  %185 = vmatpush.msra.mxu0 0.0
  %186 = vmatpush.msra.mxu0 0.0
  %187 = vmatpush.msra.mxu0 0.0
  %188 = vmatpush.msra.mxu0 0.0
  %189 = vmatpush.msra.mxu0 0.0
  %190 = vmatpush.msra.mxu0 0.0
  %v191 = vand.u32 %v74, 4294901760
  %192 = vmatpush.msra.mxu0 %v191
  %v193 = vand.u32 %v73, 4294901760
  %194 = vmatpush.msra.mxu0 %v193
  %v195 = vand.u32 %v72, 4294901760
  %196 = vmatpush.msra.mxu0 %v195
  %v197 = vand.u32 %v71, 4294901760
  %198 = vmatpush.msra.mxu0 %v197
  %v199 = vand.u32 %v77, 4294901760
  %v200 = vsub.f32 %v77, %v199
  %v201 = vand.u32 %v200, 4294901760
  %202 = vmatmul.f32.gmra.mxu0 %v201
  %v203 = vpop.f32.mrf.mxu0
  %v204 = vadd.f32 %v177, %v203
  %205 = vdwg.mxu0
  %206 = vmatpush.msra.mxu0 0.0
  %207 = vmatpush.msra.mxu0 0.0
  %208 = vmatpush.msra.mxu0 0.0
  %209 = vmatpush.msra.mxu0 0.0
  %210 = vmatpush.msra.mxu0 0.0
  %211 = vmatpush.msra.mxu0 0.0
  %212 = vmatpush.msra.mxu0 0.0
  %213 = vmatpush.msra.mxu0 0.0
  %214 = vmatpush.msra.mxu0 0.0
  %215 = vmatpush.msra.mxu0 0.0
  %216 = vmatpush.msra.mxu0 0.0
  %217 = vmatpush.msra.mxu0 0.0
  %v218 = vand.u32 %v74, 4294901760
  %v219 = vsub.f32 %v74, %v218
  %v220 = vand.u32 %v219, 4294901760
  %221 = vmatpush.msra.mxu0 %v220
  %v222 = vand.u32 %v73, 4294901760
  %v223 = vsub.f32 %v73, %v222
  %v224 = vand.u32 %v223, 4294901760
  %225 = vmatpush.msra.mxu0 %v224
  %v226 = vand.u32 %v72, 4294901760
  %v227 = vsub.f32 %v72, %v226
  %v228 = vand.u32 %v227, 4294901760
  %229 = vmatpush.msra.mxu0 %v228
  %v230 = vand.u32 %v71, 4294901760
  %v231 = vsub.f32 %v71, %v230
  %v232 = vand.u32 %v231, 4294901760
  %233 = vmatpush.msra.mxu0 %v232
  %v234 = vand.u32 %v77, 4294901760
  %235 = vmatmul.f32.gmra.mxu0 %v234
  %v236 = vpop.f32.mrf.mxu0
  %v237 = vadd.f32 %v204, %v236
  %238 = vdwg.mxu0
  %239 = vmatpush.msra.mxu0 0.0
  %240 = vmatpush.msra.mxu0 0.0
  %241 = vmatpush.msra.mxu0 0.0
  %242 = vmatpush.msra.mxu0 0.0
  %243 = vmatpush.msra.mxu0 0.0
  %244 = vmatpush.msra.mxu0 0.0
  %245 = vmatpush.msra.mxu0 0.0
  %246 = vmatpush.msra.mxu0 0.0
  %247 = vmatpush.msra.mxu0 0.0
  %248 = vmatpush.msra.mxu0 0.0
  %249 = vmatpush.msra.mxu0 0.0
  %250 = vmatpush.msra.mxu0 0.0
  %v251 = vand.u32 %v74, 4294901760
  %252 = vmatpush.msra.mxu0 %v251
  %v253 = vand.u32 %v73, 4294901760
  %254 = vmatpush.msra.mxu0 %v253
  %v255 = vand.u32 %v72, 4294901760
  %256 = vmatpush.msra.mxu0 %v255
  %v257 = vand.u32 %v71, 4294901760
  %258 = vmatpush.msra.mxu0 %v257
  %v259 = vand.u32 %v77, 4294901760
  %260 = vmatmul.f32.gmra.mxu0 %v259
  %v261 = vpop.f32.mrf.mxu0
  %v262 = vadd.f32 %v237, %v261
  %263 = vdwg.mxu0
  %v264 = vmul.f32 %v262, %v262
  %v265 = vld [vmem:[%s2 + $0x20] sm:$0x1]
  %v266 = vperm.slane %v265, 0
  %v267 = vmul.f32 %v264, %v266
  %268 = vadd.xlane.f32.xlu0 %v267
  %v269 = vpop.xlane.xlu0 %268
  %v270 = vld [vmem:[%s2 + $0x21] sm:$0x1]
  %v271 = vperm.slane %v270, 0
  %v272 = vmul.f32 %v264, %v271
  %273 = vadd.xlane.f32.xlu0 %v272
  %v274 = vpop.xlane.xlu0 %273
  %v275 = vld [vmem:[%s2 + $0x22] sm:$0x1]
  %v276 = vperm.slane %v275, 0
  %v277 = vmul.f32 %v264, %v276
  %278 = vadd.xlane.f32.xlu0 %v277
  %v279 = vpop.xlane.xlu0 %278
  %v280 = vld [vmem:[%s2 + $0x23] sm:$0x1]
  %v281 = vperm.slane %v280, 0
  %v282 = vmul.f32 %v264, %v281
  %283 = vadd.xlane.f32.xlu0 %v282
  %v284 = vpop.xlane.xlu0 %283
  %v285 = vld [vmem:[%s2 + $0x24] sm:$0x1]
  %v286 = vadd.f32 %v269, 1.1920929e-07
  %v287 = vrsqrt.pop %v286
  %v288 = vmul.f32 %v287, %v286
  %v289 = vmul.f32 %v288, %v287
  %v290 = vmul.f32 0.5, %v289
  %v291 = vsub.f32 1.5, %v290
  %v292 = vmul.f32 %v287, %v291
  %vm293 = vweird.f32 %v286
  %vm294 = vweird.f32 %v287
  %vm295 = vmor %vm293, %vm294
  %v296 = vsel %vm295, %v287, %v292
  %v297 = vperm.slane %v285, 0
  %v298 = vmul.f32 %v297, %v296
  %v299 = vld [vmem:[%s2 + $0x25] sm:$0x1]
  %v300 = vadd.f32 %v274, 1.1920929e-07
  %v301 = vrsqrt.pop %v300
  %v302 = vmul.f32 %v301, %v300
  %v303 = vmul.f32 %v302, %v301
  %v304 = vmul.f32 0.5, %v303
  %v305 = vsub.f32 1.5, %v304
  %v306 = vmul.f32 %v301, %v305
  %vm307 = vweird.f32 %v300
  %vm308 = vweird.f32 %v301
  %vm309 = vmor %vm307, %vm308
  %v310 = vsel %vm309, %v301, %v306
  %v311 = vperm.slane %v299, 0
  %v312 = vmul.f32 %v311, %v310
  %v313 = vadd.f32 %v298, %v312
  %v314 = vld [vmem:[%s2 + $0x26] sm:$0x1]
  %v315 = vadd.f32 %v279, 1.1920929e-07
  %v316 = vrsqrt.pop %v315
  %v317 = vmul.f32 %v316, %v315
  %v318 = vmul.f32 %v317, %v316
  %v319 = vmul.f32 0.5, %v318
  %v320 = vsub.f32 1.5, %v319
  %v321 = vmul.f32 %v316, %v320
  %vm322 = vweird.f32 %v315
  %vm323 = vweird.f32 %v316
  %vm324 = vmor %vm322, %vm323
  %v325 = vsel %vm324, %v316, %v321
  %v326 = vperm.slane %v314, 0
  %v327 = vmul.f32 %v326, %v325
  %v328 = vadd.f32 %v313, %v327
  %v329 = vld [vmem:[%s2 + $0x27] sm:$0x1]
  %v330 = vadd.f32 %v284, 1.1920929e-07
  %v331 = vrsqrt.pop %v330
  %v332 = vmul.f32 %v331, %v330
  %v333 = vmul.f32 %v332, %v331
  %v334 = vmul.f32 0.5, %v333
  %v335 = vsub.f32 1.5, %v334
  %v336 = vmul.f32 %v331, %v335
  %vm337 = vweird.f32 %v330
  %vm338 = vweird.f32 %v331
  %vm339 = vmor %vm337, %vm338
  %v340 = vsel %vm339, %v331, %v336
  %v341 = vperm.slane %v329, 0
  %v342 = vmul.f32 %v341, %v340
  %v343 = vadd.f32 %v328, %v342
  %v344 = vld [vmem:[%s2 + $0x28] sm:$0x1]
  %v345 = vperm.slane %v344, 0
  %v346 = vadd.f32 %v343, %v345
  %v347 = vmul.f32 %v262, %v346
  %348 = vst [vmem:[%s3] sm:$0xff] %v347
  // Predicated region
  $region14: #{user_tower_forward.1} parent=0 // pred_check
    _
  $region15: #{user_tower_forward.1} parent=0 // pred_check_branch
    %350 = sbr.rel (0) target = $region17
  $region16: #{user_tower_forward.1} parent=0 // pred_region
    _
  $region17: #{user_tower_forward.1} parent=0 // pred_fallthru
    _
  // Predicated region
  $region18: #{user_tower_forward.1} parent=0 // pred_check
    _
  $region19: #{user_tower_forward.1} parent=0 // pred_check_branch
    %352 = sbr.rel (0) target = $region21
  $region20: #{user_tower_forward.1} parent=0 // pred_region
    _
  $region21: #{user_tower_forward.1} parent=0 // pred_fallthru
    _

</llo_original>
